<compile_context>
chip_gen: v5e
topology: v5e:2x2
jax: 0.10.0
libtpu: 0.0.40
codegen_flags: <defaults>
</compile_context>

<pallas_src>
import jax
import jax.numpy as jnp
from jax.experimental import pallas as pl
from jax.experimental.pallas import tpu as pltpu


# ---------------------------------------------------------------------------
# Fused kernel: branch nets + trunk net + POD combination for one N-tile.
# Every matmul is (M, K) @ (K, Nt) with the N tile on the lane axis, so the
# output stores are lane-dense and no in-kernel transposes are needed.
# ---------------------------------------------------------------------------
def _podmionet_kernel(
    xf1_ref, xf2_ref,                      # (Bp, m1), (Bp, m2)
    b1w1_ref, b1b1_ref, b1w2_ref, b1b2_ref,  # branch1 weights
    b2w1_ref, b2b1_ref, b2w2_ref, b2b2_ref,  # branch2 weights
    tw1T_ref, tb1_ref, tw2T_ref, tb2_ref,    # trunk weights (transposed)
    xlocT_ref,                             # (d, Nt)   x_loc tile, transposed
    podT_ref,                              # (p, Nt)   pod_basis tile, transposed (maybe bf16)
    bias_ref,                              # (1, 1)    scalar b in SMEM
    out_ref,                               # (Bp, Nt)
):
    f32 = jnp.float32

    # --- branch nets (tiny; recomputed per tile, hidden under the tile DMA) ---
    h1 = jnp.tanh(
        jnp.dot(xf1_ref[...], b1w1_ref[...], preferred_element_type=f32)
        + b1b1_ref[...]
    )
    y1 = jnp.dot(h1, b1w2_ref[...], preferred_element_type=f32) + b1b2_ref[...]
    h2 = jnp.tanh(
        jnp.dot(xf2_ref[...], b2w1_ref[...], preferred_element_type=f32)
        + b2b1_ref[...]
    )
    y2 = jnp.dot(h2, b2w2_ref[...], preferred_element_type=f32) + b2b2_ref[...]
    y_func = y1 * y2                       # (Bp, p+q)  merge_operation == 'mul'

    # --- trunk FNN in transposed (feature, N) layout (trunk_last_activation=False) ---
    x = xlocT_ref[...]                     # (d, Nt) f32
    w1 = tw1T_ref[...]                     # (hidden, d) f32
    d = w1.shape[1]
    if d <= 8:
        # K == d is tiny: unrolled VPU broadcast-MACs instead of a padded MXU pass.
        z = w1[:, 0:1] * x[0:1, :]
        for i in range(1, d):
            z = z + w1[:, i:i + 1] * x[i:i + 1, :]
    else:
        z = jnp.dot(w1, x, preferred_element_type=f32)
    ht = jnp.tanh(z + tb1_ref[...])        # (hidden, Nt)
    ylocT = jnp.dot(tw2T_ref[...], ht, preferred_element_type=f32) + tb2_ref[...]  # (q, Nt)

    # --- fused combination: y = y_func @ [pod_basis, y_loc]^T + b (one MXU pass) ---
    basisT = jnp.concatenate([podT_ref[...].astype(f32), ylocT], axis=0)  # (p+q, Nt)
    y = jnp.dot(y_func, basisT, preferred_element_type=f32)
    out_ref[...] = (y + bias_ref[0, 0]).astype(out_ref.dtype)


# ---------------------------------------------------------------------------
# Host-side helpers
# ---------------------------------------------------------------------------
def _round_up(x, m):
    return (x + m - 1) // m * m


def _pick_n_tile(n, target=4096):
    """Column-tile size: multiple of 128, ~`target` wide, and >=2 (even count)
    tiles whenever N allows, so both v7x TensorCores get work on the
    'parallel' grid axis; on v5e/v6e the large tile amortizes per-step cost."""
    nr = _round_up(n, 128)
    if nr <= 128:
        return nr
    num_tiles = max(2, pl.cdiv(nr, target))
    if num_tiles % 2:
        num_tiles += 1
    return max(128, _round_up(pl.cdiv(nr, num_tiles), 128))


def _vmem_budget(Bp, p, q, d, hidden, n_tile, pod_itemsize):
    """Explicit scoped-VMEM budget: double-buffered streamed tiles plus the
    in-kernel temporaries, with headroom.  Clamped to stay safe on v7x."""
    streamed = n_tile * (d * 4 + p * pod_itemsize + Bp * 4)      # xlocT + podT + out
    temps = n_tile * ((p + q) * 4 + hidden * 4)                  # concat + ht
    est = 2 * streamed + temps + (4 << 20)
    return int(min(max(est, 16 << 20), 48 << 20))


def podmionet_forward(params, x_func1, x_func2, x_loc, *, n_tile=None,
                      pod_dtype=jnp.bfloat16):
    f32 = jnp.float32
    B, m1 = x_func1.shape
    m2 = x_func2.shape[1]
    N, p = params["pod_basis"].shape
    hidden = params["t_w1"].shape[1]
    q = params["t_w2"].shape[1]
    d = x_loc.shape[1]
    pq = p + q

    # ---- padding: batch -> multiple of 8 (sublane); N -> multiple of n_tile
    Bp = _round_up(B, 8)
    if n_tile is None:
        n_tile = _pick_n_tile(N)
    else:
        n_tile = _round_up(n_tile, 128)
    Np = _round_up(N, n_tile)
    num_tiles = Np // n_tile

    xf1 = jnp.zeros((Bp, m1), f32).at[:B].set(x_func1.astype(f32))
    xf2 = jnp.zeros((Bp, m2), f32).at[:B].set(x_func2.astype(f32))

    # ---- one-time XLA transposes / zero-padding of the N-axis operands
    xlocT = jnp.zeros((d, Np), f32).at[:, :N].set(x_loc.astype(f32).T)
    podT = (
        jnp.zeros((p, Np), f32).at[:, :N].set(params["pod_basis"].astype(f32).T)
    ).astype(pod_dtype)                     # dominant HBM stream: bf16 halves it

    tw1T = params["t_w1"].T.astype(f32)     # (hidden, d)
    tb1c = params["t_b1"].T.astype(f32)     # (hidden, 1)
    tw2T = params["t_w2"].T.astype(f32)     # (q, hidden)
    tb2c = params["t_b2"].T.astype(f32)     # (q, 1)

    vmem_limit = _vmem_budget(Bp, p, q, d, hidden, n_tile,
                              jnp.dtype(pod_dtype).itemsize)

    def full(shape):
        return pl.BlockSpec(shape, lambda j: (0, 0))

    out_pad = pl.pallas_call(
        _podmionet_kernel,
        out_shape=jax.ShapeDtypeStruct((Bp, Np), f32),
        grid=(num_tiles,),
        in_specs=[
            full((Bp, m1)),                 # x_func1
            full((Bp, m2)),                 # x_func2
            full((m1, hidden)), full((1, hidden)),   # branch1 layer 1
            full((hidden, pq)), full((1, pq)),       # branch1 layer 2
            full((m2, hidden)), full((1, hidden)),   # branch2 layer 1
            full((hidden, pq)), full((1, pq)),       # branch2 layer 2
            full((hidden, d)), full((hidden, 1)),    # trunk layer 1 (transposed)
            full((q, hidden)), full((q, 1)),         # trunk layer 2 (transposed)
            pl.BlockSpec((d, n_tile), lambda j: (0, j)),   # x_loc^T tile
            pl.BlockSpec((p, n_tile), lambda j: (0, j)),   # pod_basis^T tile
            pl.BlockSpec(memory_space=pltpu.MemorySpace.SMEM),  # scalar bias b
        ],
        out_specs=pl.BlockSpec((Bp, n_tile), lambda j: (0, j)),
        compiler_params=pltpu.CompilerParams(
            dimension_semantics=("parallel",),
            vmem_limit_bytes=vmem_limit,
        ),
    )(
        xf1, xf2,
        params["b1_w1"].astype(f32), params["b1_b1"].astype(f32),
        params["b1_w2"].astype(f32), params["b1_b2"].astype(f32),
        params["b2_w1"].astype(f32), params["b2_b1"].astype(f32),
        params["b2_w2"].astype(f32), params["b2_b2"].astype(f32),
        tw1T, tb1c, tw2T, tb2c, xlocT, podT, params["b"].astype(f32),
    )

    return out_pad[:B, :N]


def podmionet_reference(params, x_func1, x_func2, x_loc):
    """Pure-JAX reference mirroring PODMIONet.forward semantics."""
    h1 = jnp.tanh(x_func1 @ params["b1_w1"] + params["b1_b1"])
    y1 = h1 @ params["b1_w2"] + params["b1_b2"]
    h2 = jnp.tanh(x_func2 @ params["b2_w1"] + params["b2_b1"])
    y2 = h2 @ params["b2_w2"] + params["b2_b2"]
    y_func = y1 * y2
    ht = jnp.tanh(x_loc @ params["t_w1"] + params["t_b1"])
    y_loc = ht @ params["t_w2"] + params["t_b2"]
    basis = jnp.concatenate([params["pod_basis"], y_loc], axis=1)
    y = jnp.einsum("bi,ni->bn", y_func, basis)
    return y + params["b"][0, 0]


def glorot(key, shape):
    fan_in, fan_out = shape
    std = (2.0 / (fan_in + fan_out)) ** 0.5
    return std * jax.random.normal(key, shape, dtype=jnp.float32)


def make_params(key, m1, m2, d, hidden, p, q, n_points):
    ks = jax.random.split(key, 8)
    out_dim = p + q  # branch output must equal pod modes + trunk output dim
    return {
        # branch1: [m1, hidden, p+q]
        "b1_w1": glorot(ks[0], (m1, hidden)),
        "b1_b1": jnp.zeros((1, hidden), jnp.float32),
        "b1_w2": glorot(ks[1], (hidden, out_dim)),
        "b1_b2": jnp.zeros((1, out_dim), jnp.float32),
        # branch2: [m2, hidden, p+q]
        "b2_w1": glorot(ks[2], (m2, hidden)),
        "b2_b1": jnp.zeros((1, hidden), jnp.float32),
        "b2_w2": glorot(ks[3], (hidden, out_dim)),
        "b2_b2": jnp.zeros((1, out_dim), jnp.float32),
        # trunk: [d, hidden, q]
        "t_w1": glorot(ks[4], (d, hidden)),
        "t_b1": jnp.zeros((1, hidden), jnp.float32),
        "t_w2": glorot(ks[5], (hidden, q)),
        "t_b2": jnp.zeros((1, q), jnp.float32),
        # POD basis (n_points, p)
        "pod_basis": jax.random.normal(ks[6], (n_points, p), dtype=jnp.float32),
        # trainable scalar bias b (stored as (1,1); lives in SMEM in-kernel)
        "b": jnp.zeros((1, 1), jnp.float32),
    }


if __name__ == "__main__":
    key = jax.random.PRNGKey(0)
    k_par, k1, k2, k3 = jax.random.split(key, 4)

    # small, module-consistent shapes; N chosen so the auto tile picker
    # produces 2 parallel tiles (v7x megacore) and exercises N padding.
    B = 4        # batch of input functions
    m1 = 10      # branch1 input sensors
    m2 = 12      # branch2 input sensors
    d = 2        # trunk input (location) dim
    hidden = 32
    p = 8        # POD modes
    q = 8        # trunk output dim
    N = 300      # number of evaluation points (rows of pod_basis)

    params = make_params(k_par, m1, m2, d, hidden, p, q, N)
    x_func1 = jax.random.normal(k1, (B, m1), dtype=jnp.float32)
    x_func2 = jax.random.normal(k2, (B, m2), dtype=jnp.float32)
    x_loc = jax.random.normal(k3, (N, d), dtype=jnp.float32)

    y_ref = podmionet_reference(params, x_func1, x_func2, x_loc)

    # 1) default (bf16 pod_basis storage) path: tight check vs a reference that
    #    uses the same bf16-rounded pod_basis (accumulation is f32 everywhere),
    #    plus a loose sanity check against the exact reference.
    y = podmionet_forward(params, x_func1, x_func2, x_loc)
    y = jax.block_until_ready(y)
    assert y.shape == (B, N)
    params_rounded = dict(
        params,
        pod_basis=params["pod_basis"].astype(jnp.bfloat16).astype(jnp.float32),
    )
    y_ref_rounded = podmionet_reference(params_rounded, x_func1, x_func2, x_loc)
    assert jnp.allclose(y, y_ref_rounded, atol=1e-4, rtol=1e-4), "bf16-pod mismatch"
    assert jnp.allclose(y, y_ref, atol=5e-2, rtol=5e-2), "bf16-pod drift too large"

    # 2) exact-storage (f32 pod_basis) path: tight check vs exact reference.
    y32 = podmionet_forward(params, x_func1, x_func2, x_loc, pod_dtype=jnp.float32)
    y32 = jax.block_until_ready(y32)
    assert jnp.allclose(y32, y_ref, atol=1e-4, rtol=1e-4), "f32 mismatch vs reference"

    print("KERNEL_OK")
</pallas_src>

<mosaic_0001>
module attributes {stable_mosaic.version = 11 : i64} {
  func.func @_podmionet_kernel(%arg0: i32, %arg1: memref<8x10xf32, #tpu.memory_space<vmem>>, %arg2: memref<8x12xf32, #tpu.memory_space<vmem>>, %arg3: memref<10x32xf32, #tpu.memory_space<vmem>>, %arg4: memref<1x32xf32, #tpu.memory_space<vmem>>, %arg5: memref<32x16xf32, #tpu.memory_space<vmem>>, %arg6: memref<1x16xf32, #tpu.memory_space<vmem>>, %arg7: memref<12x32xf32, #tpu.memory_space<vmem>>, %arg8: memref<1x32xf32, #tpu.memory_space<vmem>>, %arg9: memref<32x16xf32, #tpu.memory_space<vmem>>, %arg10: memref<1x16xf32, #tpu.memory_space<vmem>>, %arg11: memref<32x2xf32, #tpu.memory_space<vmem>>, %arg12: memref<32x1xf32, #tpu.memory_space<vmem>>, %arg13: memref<8x32xf32, #tpu.memory_space<vmem>>, %arg14: memref<8x1xf32, #tpu.memory_space<vmem>>, %arg15: memref<2x256xf32, #tpu.memory_space<vmem>>, %arg16: memref<8x256xbf16, #tpu.memory_space<vmem>>, %arg17: memref<1x1xf32, #tpu.memory_space<smem>>, %arg18: memref<8x256xf32, #tpu.memory_space<vmem>>) attributes {dimension_semantics = [#tpu.dimension_semantics<parallel>], iteration_bounds = array<i64: 2>, scalar_prefetch = 0 : i64, scratch_operands = 0 : i64, tpu.core_type = #tpu.core_type<tc>, window_params = [{pipeline_mode = #tpu.pipeline_mode<synchronous>, transform_indices = @transform_0, window_bounds = array<i64: 8, 10>}, {pipeline_mode = #tpu.pipeline_mode<synchronous>, transform_indices = @transform_1, window_bounds = array<i64: 8, 12>}, {pipeline_mode = #tpu.pipeline_mode<synchronous>, transform_indices = @transform_2, window_bounds = array<i64: 10, 32>}, {pipeline_mode = #tpu.pipeline_mode<synchronous>, transform_indices = @transform_3, window_bounds = array<i64: 1, 32>}, {pipeline_mode = #tpu.pipeline_mode<synchronous>, transform_indices = @transform_4, window_bounds = array<i64: 32, 16>}, {pipeline_mode = #tpu.pipeline_mode<synchronous>, transform_indices = @transform_5, window_bounds = array<i64: 1, 16>}, {pipeline_mode = #tpu.pipeline_mode<synchronous>, transform_indices = @transform_6, window_bounds = array<i64: 12, 32>}, {pipeline_mode = #tpu.pipeline_mode<synchronous>, transform_indices = @transform_7, window_bounds = array<i64: 1, 32>}, {pipeline_mode = #tpu.pipeline_mode<synchronous>, transform_indices = @transform_8, window_bounds = array<i64: 32, 16>}, {pipeline_mode = #tpu.pipeline_mode<synchronous>, transform_indices = @transform_9, window_bounds = array<i64: 1, 16>}, {pipeline_mode = #tpu.pipeline_mode<synchronous>, transform_indices = @transform_10, window_bounds = array<i64: 32, 2>}, {pipeline_mode = #tpu.pipeline_mode<synchronous>, transform_indices = @transform_11, window_bounds = array<i64: 32, 1>}, {pipeline_mode = #tpu.pipeline_mode<synchronous>, transform_indices = @transform_12, window_bounds = array<i64: 8, 32>}, {pipeline_mode = #tpu.pipeline_mode<synchronous>, transform_indices = @transform_13, window_bounds = array<i64: 8, 1>}, {transform_indices = @transform_14, window_bounds = array<i64: 2, 256>}, {transform_indices = @transform_15, window_bounds = array<i64: 8, 256>}, {transform_indices = @transform_16, window_bounds = array<i64: 1, 1>}, {transform_indices = @transform_17, window_bounds = array<i64: 8, 256>}]} {
    %c0 = arith.constant 0 : index
    %c0_0 = arith.constant 0 : index
    %0 = vector.load %arg1[%c0, %c0_0] : memref<8x10xf32, #tpu.memory_space<vmem>>, vector<8x10xf32>
    %c0_1 = arith.constant 0 : index
    %c0_2 = arith.constant 0 : index
    %1 = vector.load %arg3[%c0_1, %c0_2] : memref<10x32xf32, #tpu.memory_space<vmem>>, vector<10x32xf32>
    %cst = arith.constant dense<0.000000e+00> : vector<8x32xf32>
    %2 = tpu.matmul %0, %1, %cst {dimension_numbers = #tpu.dot_dimension_numbers<[1], [0], [0], [1], [0, 0, 1, 1], [], []>} : vector<8x10xf32>, vector<10x32xf32>, vector<8x32xf32> -> vector<8x32xf32>
    %c0_3 = arith.constant 0 : index
    %c0_4 = arith.constant 0 : index
    %3 = vector.load %arg4[%c0_3, %c0_4] : memref<1x32xf32, #tpu.memory_space<vmem>>, vector<1x32xf32>
    %4 = vector.broadcast %3 : vector<1x32xf32> to vector<8x32xf32>
    %5 = arith.addf %2, %4 : vector<8x32xf32>
    %6 = math.tanh %5 : vector<8x32xf32>
    %c0_5 = arith.constant 0 : index
    %c0_6 = arith.constant 0 : index
    %7 = vector.load %arg5[%c0_5, %c0_6] : memref<32x16xf32, #tpu.memory_space<vmem>>, vector<32x16xf32>
    %cst_7 = arith.constant dense<0.000000e+00> : vector<8x16xf32>
    %8 = tpu.matmul %6, %7, %cst_7 {dimension_numbers = #tpu.dot_dimension_numbers<[1], [0], [0], [1], [0, 0, 1, 1], [], []>} : vector<8x32xf32>, vector<32x16xf32>, vector<8x16xf32> -> vector<8x16xf32>
    %c0_8 = arith.constant 0 : index
    %c0_9 = arith.constant 0 : index
    %9 = vector.load %arg6[%c0_8, %c0_9] : memref<1x16xf32, #tpu.memory_space<vmem>>, vector<1x16xf32>
    %10 = vector.broadcast %9 : vector<1x16xf32> to vector<8x16xf32>
    %11 = arith.addf %8, %10 : vector<8x16xf32>
    %c0_10 = arith.constant 0 : index
    %c0_11 = arith.constant 0 : index
    %12 = vector.load %arg2[%c0_10, %c0_11] : memref<8x12xf32, #tpu.memory_space<vmem>>, vector<8x12xf32>
    %c0_12 = arith.constant 0 : index
    %c0_13 = arith.constant 0 : index
    %13 = vector.load %arg7[%c0_12, %c0_13] : memref<12x32xf32, #tpu.memory_space<vmem>>, vector<12x32xf32>
    %cst_14 = arith.constant dense<0.000000e+00> : vector<8x32xf32>
    %14 = tpu.matmul %12, %13, %cst_14 {dimension_numbers = #tpu.dot_dimension_numbers<[1], [0], [0], [1], [0, 0, 1, 1], [], []>} : vector<8x12xf32>, vector<12x32xf32>, vector<8x32xf32> -> vector<8x32xf32>
    %c0_15 = arith.constant 0 : index
    %c0_16 = arith.constant 0 : index
    %15 = vector.load %arg8[%c0_15, %c0_16] : memref<1x32xf32, #tpu.memory_space<vmem>>, vector<1x32xf32>
    %16 = vector.broadcast %15 : vector<1x32xf32> to vector<8x32xf32>
    %17 = arith.addf %14, %16 : vector<8x32xf32>
    %18 = math.tanh %17 : vector<8x32xf32>
    %c0_17 = arith.constant 0 : index
    %c0_18 = arith.constant 0 : index
    %19 = vector.load %arg9[%c0_17, %c0_18] : memref<32x16xf32, #tpu.memory_space<vmem>>, vector<32x16xf32>
    %cst_19 = arith.constant dense<0.000000e+00> : vector<8x16xf32>
    %20 = tpu.matmul %18, %19, %cst_19 {dimension_numbers = #tpu.dot_dimension_numbers<[1], [0], [0], [1], [0, 0, 1, 1], [], []>} : vector<8x32xf32>, vector<32x16xf32>, vector<8x16xf32> -> vector<8x16xf32>
    %c0_20 = arith.constant 0 : index
    %c0_21 = arith.constant 0 : index
    %21 = vector.load %arg10[%c0_20, %c0_21] : memref<1x16xf32, #tpu.memory_space<vmem>>, vector<1x16xf32>
    %22 = vector.broadcast %21 : vector<1x16xf32> to vector<8x16xf32>
    %23 = arith.addf %20, %22 : vector<8x16xf32>
    %24 = arith.mulf %11, %23 : vector<8x16xf32>
    %c0_22 = arith.constant 0 : index
    %c0_23 = arith.constant 0 : index
    %25 = vector.load %arg15[%c0_22, %c0_23] : memref<2x256xf32, #tpu.memory_space<vmem>>, vector<2x256xf32>
    %c0_24 = arith.constant 0 : index
    %c0_25 = arith.constant 0 : index
    %26 = vector.load %arg11[%c0_24, %c0_25] : memref<32x2xf32, #tpu.memory_space<vmem>>, vector<32x2xf32>
    %27 = vector.extract_strided_slice %26 {offsets = [0, 0], sizes = [32, 1], strides = [1, 1]} : vector<32x2xf32> to vector<32x1xf32>
    %28 = vector.extract_strided_slice %25 {offsets = [0, 0], sizes = [1, 256], strides = [1, 1]} : vector<2x256xf32> to vector<1x256xf32>
    %29 = vector.broadcast %27 : vector<32x1xf32> to vector<32x256xf32>
    %30 = vector.broadcast %28 : vector<1x256xf32> to vector<32x256xf32>
    %31 = arith.mulf %29, %30 : vector<32x256xf32>
    %32 = vector.extract_strided_slice %26 {offsets = [0, 1], sizes = [32, 1], strides = [1, 1]} : vector<32x2xf32> to vector<32x1xf32>
    %33 = vector.extract_strided_slice %25 {offsets = [1, 0], sizes = [1, 256], strides = [1, 1]} : vector<2x256xf32> to vector<1x256xf32>
    %34 = vector.broadcast %32 : vector<32x1xf32> to vector<32x256xf32>
    %35 = vector.broadcast %33 : vector<1x256xf32> to vector<32x256xf32>
    %36 = arith.mulf %34, %35 : vector<32x256xf32>
    %37 = arith.addf %31, %36 : vector<32x256xf32>
    %c0_26 = arith.constant 0 : index
    %c0_27 = arith.constant 0 : index
    %38 = vector.load %arg12[%c0_26, %c0_27] : memref<32x1xf32, #tpu.memory_space<vmem>>, vector<32x1xf32>
    %39 = vector.broadcast %38 : vector<32x1xf32> to vector<32x256xf32>
    %40 = arith.addf %37, %39 : vector<32x256xf32>
    %41 = math.tanh %40 : vector<32x256xf32>
    %c0_28 = arith.constant 0 : index
    %c0_29 = arith.constant 0 : index
    %42 = vector.load %arg13[%c0_28, %c0_29] : memref<8x32xf32, #tpu.memory_space<vmem>>, vector<8x32xf32>
    %cst_30 = arith.constant dense<0.000000e+00> : vector<8x256xf32>
    %43 = tpu.matmul %42, %41, %cst_30 {dimension_numbers = #tpu.dot_dimension_numbers<[1], [0], [0], [1], [0, 0, 1, 1], [], []>} : vector<8x32xf32>, vector<32x256xf32>, vector<8x256xf32> -> vector<8x256xf32>
    %c0_31 = arith.constant 0 : index
    %c0_32 = arith.constant 0 : index
    %44 = vector.load %arg14[%c0_31, %c0_32] : memref<8x1xf32, #tpu.memory_space<vmem>>, vector<8x1xf32>
    %45 = vector.broadcast %44 : vector<8x1xf32> to vector<8x256xf32>
    %46 = arith.addf %43, %45 : vector<8x256xf32>
    %c0_33 = arith.constant 0 : index
    %c0_34 = arith.constant 0 : index
    %47 = vector.load %arg16[%c0_33, %c0_34] : memref<8x256xbf16, #tpu.memory_space<vmem>>, vector<8x256xbf16>
    %48 = arith.extf %47 : vector<8x256xbf16> to vector<8x256xf32>
    %49 = tpu.concatenate %48, %46 in 0 : vector<8x256xf32>, vector<8x256xf32> -> vector<16x256xf32>
    %cst_35 = arith.constant dense<0.000000e+00> : vector<8x256xf32>
    %50 = tpu.matmul %24, %49, %cst_35 {dimension_numbers = #tpu.dot_dimension_numbers<[1], [0], [0], [1], [0, 0, 1, 1], [], []>} : vector<8x16xf32>, vector<16x256xf32>, vector<8x256xf32> -> vector<8x256xf32>
    %c0_36 = arith.constant 0 : index
    %c0_37 = arith.constant 0 : index
    %51 = memref.load %arg17[%c0_36, %c0_37] : memref<1x1xf32, #tpu.memory_space<smem>>
    %52 = vector.broadcast %51 : f32 to vector<8x256xf32>
    %53 = arith.addf %50, %52 : vector<8x256xf32>
    %c0_38 = arith.constant 0 : index
    %c0_39 = arith.constant 0 : index
    %54 = vector.load %arg18[%c0_38, %c0_39] : memref<8x256xf32, #tpu.memory_space<vmem>>, vector<8x256xf32>
    tpu.vector_store %arg18[%c0_38, %c0_39], %53 {strides = array<i32>} : memref<8x256xf32, #tpu.memory_space<vmem>>, vector<8x256xf32>,
    return
  }
  func.func @transform_0(%arg0: i32) -> (i32, i32) {
    %c0_i32 = arith.constant 0 : i32
    %c0_i32_0 = arith.constant 0 : i32
    %c0_i32_1 = arith.constant 0 : i32
    return %c0_i32, %c0_i32_0 : i32, i32
  }
  func.func @transform_1(%arg0: i32) -> (i32, i32) {
    %c0_i32 = arith.constant 0 : i32
    %c0_i32_0 = arith.constant 0 : i32
    %c0_i32_1 = arith.constant 0 : i32
    return %c0_i32, %c0_i32_0 : i32, i32
  }
  func.func @transform_2(%arg0: i32) -> (i32, i32) {
    %c0_i32 = arith.constant 0 : i32
    %c0_i32_0 = arith.constant 0 : i32
    %c0_i32_1 = arith.constant 0 : i32
    return %c0_i32, %c0_i32_0 : i32, i32
  }
  func.func @transform_3(%arg0: i32) -> (i32, i32) {
    %c0_i32 = arith.constant 0 : i32
    %c0_i32_0 = arith.constant 0 : i32
    %c0_i32_1 = arith.constant 0 : i32
    return %c0_i32, %c0_i32_0 : i32, i32
  }
  func.func @transform_4(%arg0: i32) -> (i32, i32) {
    %c0_i32 = arith.constant 0 : i32
    %c0_i32_0 = arith.constant 0 : i32
    %c0_i32_1 = arith.constant 0 : i32
    return %c0_i32, %c0_i32_0 : i32, i32
  }
  func.func @transform_5(%arg0: i32) -> (i32, i32) {
    %c0_i32 = arith.constant 0 : i32
    %c0_i32_0 = arith.constant 0 : i32
    %c0_i32_1 = arith.constant 0 : i32
    return %c0_i32, %c0_i32_0 : i32, i32
  }
  func.func @transform_6(%arg0: i32) -> (i32, i32) {
    %c0_i32 = arith.constant 0 : i32
    %c0_i32_0 = arith.constant 0 : i32
    %c0_i32_1 = arith.constant 0 : i32
    return %c0_i32, %c0_i32_0 : i32, i32
  }
  func.func @transform_7(%arg0: i32) -> (i32, i32) {
    %c0_i32 = arith.constant 0 : i32
    %c0_i32_0 = arith.constant 0 : i32
    %c0_i32_1 = arith.constant 0 : i32
    return %c0_i32, %c0_i32_0 : i32, i32
  }
  func.func @transform_8(%arg0: i32) -> (i32, i32) {
    %c0_i32 = arith.constant 0 : i32
    %c0_i32_0 = arith.constant 0 : i32
    %c0_i32_1 = arith.constant 0 : i32
    return %c0_i32, %c0_i32_0 : i32, i32
  }
  func.func @transform_9(%arg0: i32) -> (i32, i32) {
    %c0_i32 = arith.constant 0 : i32
    %c0_i32_0 = arith.constant 0 : i32
    %c0_i32_1 = arith.constant 0 : i32
    return %c0_i32, %c0_i32_0 : i32, i32
  }
  func.func @transform_10(%arg0: i32) -> (i32, i32) {
    %c0_i32 = arith.constant 0 : i32
    %c0_i32_0 = arith.constant 0 : i32
    %c0_i32_1 = arith.constant 0 : i32
    return %c0_i32, %c0_i32_0 : i32, i32
  }
  func.func @transform_11(%arg0: i32) -> (i32, i32) {
    %c0_i32 = arith.constant 0 : i32
    %c0_i32_0 = arith.constant 0 : i32
    %c0_i32_1 = arith.constant 0 : i32
    return %c0_i32, %c0_i32_0 : i32, i32
  }
  func.func @transform_12(%arg0: i32) -> (i32, i32) {
    %c0_i32 = arith.constant 0 : i32
    %c0_i32_0 = arith.constant 0 : i32
    %c0_i32_1 = arith.constant 0 : i32
    return %c0_i32, %c0_i32_0 : i32, i32
  }
  func.func @transform_13(%arg0: i32) -> (i32, i32) {
    %c0_i32 = arith.constant 0 : i32
    %c0_i32_0 = arith.constant 0 : i32
    %c0_i32_1 = arith.constant 0 : i32
    return %c0_i32, %c0_i32_0 : i32, i32
  }
  func.func @transform_14(%arg0: i32) -> (i32, i32) {
    %c0_i32 = arith.constant 0 : i32
    %c0_i32_0 = arith.constant 0 : i32
    return %c0_i32, %arg0 : i32, i32
  }
  func.func @transform_15(%arg0: i32) -> (i32, i32) {
    %c0_i32 = arith.constant 0 : i32
    %c0_i32_0 = arith.constant 0 : i32
    return %c0_i32, %arg0 : i32, i32
  }
  func.func @transform_16(%arg0: i32) -> (i32, i32) {
    %c0_i32 = arith.constant 0 : i32
    %c0_i32_0 = arith.constant 0 : i32
    %c0_i32_1 = arith.constant 0 : i32
    return %c0_i32, %c0_i32_0 : i32, i32
  }
  func.func @transform_17(%arg0: i32) -> (i32, i32) {
    %c0_i32 = arith.constant 0 : i32
    %c0_i32_0 = arith.constant 0 : i32
    return %c0_i32, %arg0 : i32, i32
  }
}

</mosaic_0001>

<llo_original>
// kernel: tpu_custom_call.1
$region0: #{tpu_custom_call.1}
  #allocation0 [shape = 'u32[]', space=smem, size = 0x4, offset = 0x4, fixed_abs, tag = 'smem constant byte address 0x4 - core index']
  #allocation1 [shape = 'u32[72,128]{1,0:T(1,128)}', space=vmem, size = 0x9000, scoped, tag = 'internal scratch']
  #allocation2 [shape = 'f32[1,1]{1,0:T(1,128)S(6)}', space=smem, size = 0x200, scoped, tag = 'scoped memory for tpu_custom_call.1']
  %s0 = inlined_call_operand.vmem [shape: f32[8,10], index: 0, kind: input, shape index: {}]
  %s1 = inlined_call_operand.vmem [shape: f32[8,12], index: 1, kind: input, shape index: {}]
  %s2 = inlined_call_operand.vmem [shape: f32[10,32], index: 2, kind: input, shape index: {}]
  %s3 = inlined_call_operand.vmem [shape: f32[1,32], index: 3, kind: input, shape index: {}]
  %s4 = inlined_call_operand.vmem [shape: f32[32,16], index: 4, kind: input, shape index: {}]
  %s5 = inlined_call_operand.vmem [shape: f32[1,16], index: 5, kind: input, shape index: {}]
  %s6 = inlined_call_operand.vmem [shape: f32[12,32], index: 6, kind: input, shape index: {}]
  %s7 = inlined_call_operand.vmem [shape: f32[1,32], index: 7, kind: input, shape index: {}]
  %s8 = inlined_call_operand.vmem [shape: f32[32,16], index: 8, kind: input, shape index: {}]
  %s9 = inlined_call_operand.vmem [shape: f32[1,16], index: 9, kind: input, shape index: {}]
  %s10 = inlined_call_operand.vmem [shape: f32[32,2], index: 10, kind: input, shape index: {}]
  %s11 = inlined_call_operand.vmem [shape: f32[32,1], index: 11, kind: input, shape index: {}]
  %s12 = inlined_call_operand.vmem [shape: f32[8,32], index: 12, kind: input, shape index: {}]
  %s13 = inlined_call_operand.vmem [shape: f32[8,1], index: 13, kind: input, shape index: {}]
  %s14 = inlined_call_operand.vmem [shape: f32[2,512], index: 14, kind: input, shape index: {}]
  %s15 = inlined_call_operand.vmem [shape: bf16[8,512], index: 15, kind: input, shape index: {}]
  %s16 = inlined_call_operand.<no memory space> [shape: f32[1,1], index: 16, kind: input, shape index: {}]
  %s17 = inlined_call_operand.hbm [shape: f32[8,512], index: 17, kind: output, shape index: {}]
  %s18 = sld [smem:[#allocation0]]
  $region101: #{tpu_custom_call.1} parent=0
    _
  %s20 = ssub.s32 1, %s18
  %s21 = scalar_select 0, %s20, %s18
  %22 = sst [smem:[#allocation2]] %s16
  $region1: #{tpu_custom_call.1} parent=0
    #allocation3 [shape = 'u8[16384]{0}', space=vmem, size = 0x4000, scoped, tag = 'output window, operand 0']
    #allocation4 [shape = 's32[2]{0}', space=sflag, size = 0x8, scoped, tag = 'scoped memory for tpu_custom_call.1']
    %23 = vsyncpa [#allocation4], 0
    %s24 = scalar_lea.sflag [#allocation4], 1
    %25 = vsyncpa %s24, 0
    loop: start=0, step=1, limit=4
    $region2: #{tpu_custom_call.1} parent=1 // loop_pre_header
      _
    $region3: #{tpu_custom_call.1} parent=1 // loop_header
      %s27 = sphi 0, %s31
      %p28 = scmp.ge.s32.totalorder %s27, 4
      %s35 = sphi 0, %s35
      %s37 = sphi 0, %s35
      %s38 = sphi 0, %s37
      %s52 = sphi 0, %s38
      %s56 = sphi 0, %s56
      %s58 = sphi 0, %s56
      %s59 = sphi 0, %s58
      %s73 = sphi 0, %s59
      %s77 = sphi 0, %s77
      %s79 = sphi 0, %s77
      %s80 = sphi 0, %s79
      %s94 = sphi 0, %s80
      %s98 = sphi 0, %s98
      %s100 = sphi 0, %s98
      %s101 = sphi 0, %s100
      %s115 = sphi 0, %s101
      %s119 = sphi 0, %s119
      %s121 = sphi 0, %s119
      %s122 = sphi 0, %s121
      %s136 = sphi 0, %s122
      %s140 = sphi 0, %s140
      %s142 = sphi 0, %s140
      %s143 = sphi 0, %s142
      %s157 = sphi 0, %s143
      %s161 = sphi 0, %s161
      %s163 = sphi 0, %s161
      %s164 = sphi 0, %s163
      %s178 = sphi 0, %s164
      %s182 = sphi 0, %s182
      %s184 = sphi 0, %s182
      %s185 = sphi 0, %s184
      %s199 = sphi 0, %s185
      %s203 = sphi 0, %s203
      %s205 = sphi 0, %s203
      %s206 = sphi 0, %s205
      %s220 = sphi 0, %s206
      %s224 = sphi 0, %s224
      %s226 = sphi 0, %s224
      %s227 = sphi 0, %s226
      %s241 = sphi 0, %s227
      %s245 = sphi 0, %s245
      %s247 = sphi 0, %s245
      %s248 = sphi 0, %s247
      %s262 = sphi 0, %s248
      %s266 = sphi 0, %s266
      %s268 = sphi 0, %s266
      %s269 = sphi 0, %s268
      %s283 = sphi 0, %s269
      %s287 = sphi 0, %s287
      %s289 = sphi 0, %s287
      %s290 = sphi 0, %s289
      %s304 = sphi 0, %s290
      %s308 = sphi 0, %s308
      %s310 = sphi 0, %s308
      %s311 = sphi 0, %s310
      %s325 = sphi 0, %s311
      %s331 = sphi 0, %s333
      %s334 = sphi 0, %s331
      %s335 = sphi 0, %s334
      %s351 = sphi 0, %s335
      %s357 = sphi 0, %s359
      %s360 = sphi 0, %s357
      %s361 = sphi 0, %s360
      %s377 = sphi 0, %s361
      %s381 = sphi 0, %s381
      %s383 = sphi 0, %s381
      %s384 = sphi 0, %s383
      %s398 = sphi 0, %s384
      %s404 = sphi 0, %s406
      %s407 = sphi 0, %s404
      %s408 = sphi 0, %s407
      %s424 = sphi 0, %s408
    $region4: #{tpu_custom_call.1} parent=1 // loop_header_branch
      %30 = sbr.rel (%p28) target = $region8
    $region5: #{tpu_custom_call.1} parent=1 // loop_body
      %s32 = ssub.s32 %s27, 1
      %s33 = ssub.s32 %s27, 2
      %s34 = sadd.s32 %s27, 1
      %s36 = sadd.s32 %s35, 1
      %p39 = scmp.eq.s32.totalorder %s27, 1
      %p40 = scmp.ne.s32.totalorder %s35, %s37
      %p41 = scmp.eq.s32.totalorder %s27, 0
      %p42 = por %p40, %p41
      %p43 = scmp.ne.s32.totalorder %s35, %s37
      %p44 = scmp.eq.s32.totalorder %s32, 1
      %p45 = por %p43, %p44
      %p46 = scmp.ne.s32.totalorder %s37, %s38
      %p47 = scmp.eq.s32.totalorder %s32, 0
      %p48 = por %p46, %p47
      %p49 = scmp.ne.s32.totalorder %s37, %s38
      %p50 = scmp.eq.s32.totalorder %s33, 1
      %p51 = por %p49, %p50
      %p53 = scmp.ne.s32.totalorder %s38, %s52
      %p54 = scmp.eq.s32.totalorder %s33, 0
      %p55 = por %p53, %p54
      %s57 = sadd.s32 %s56, 1
      %p60 = scmp.eq.s32.totalorder %s27, 1
      %p61 = scmp.ne.s32.totalorder %s56, %s58
      %p62 = scmp.eq.s32.totalorder %s27, 0
      %p63 = por %p61, %p62
      %p64 = scmp.ne.s32.totalorder %s56, %s58
      %p65 = scmp.eq.s32.totalorder %s32, 1
      %p66 = por %p64, %p65
      %p67 = scmp.ne.s32.totalorder %s58, %s59
      %p68 = scmp.eq.s32.totalorder %s32, 0
      %p69 = por %p67, %p68
      %p70 = scmp.ne.s32.totalorder %s58, %s59
      %p71 = scmp.eq.s32.totalorder %s33, 1
      %p72 = por %p70, %p71
      %p74 = scmp.ne.s32.totalorder %s59, %s73
      %p75 = scmp.eq.s32.totalorder %s33, 0
      %p76 = por %p74, %p75
      %s78 = sadd.s32 %s77, 1
      %p81 = scmp.eq.s32.totalorder %s27, 1
      %p82 = scmp.ne.s32.totalorder %s77, %s79
      %p83 = scmp.eq.s32.totalorder %s27, 0
      %p84 = por %p82, %p83
      %p85 = scmp.ne.s32.totalorder %s77, %s79
      %p86 = scmp.eq.s32.totalorder %s32, 1
      %p87 = por %p85, %p86
      %p88 = scmp.ne.s32.totalorder %s79, %s80
      %p89 = scmp.eq.s32.totalorder %s32, 0
      %p90 = por %p88, %p89
      %p91 = scmp.ne.s32.totalorder %s79, %s80
      %p92 = scmp.eq.s32.totalorder %s33, 1
      %p93 = por %p91, %p92
      %p95 = scmp.ne.s32.totalorder %s80, %s94
      %p96 = scmp.eq.s32.totalorder %s33, 0
      %p97 = por %p95, %p96
      %s99 = sadd.s32 %s98, 1
      %p102 = scmp.eq.s32.totalorder %s27, 1
      %p103 = scmp.ne.s32.totalorder %s98, %s100
      %p104 = scmp.eq.s32.totalorder %s27, 0
      %p105 = por %p103, %p104
      %p106 = scmp.ne.s32.totalorder %s98, %s100
      %p107 = scmp.eq.s32.totalorder %s32, 1
      %p108 = por %p106, %p107
      %p109 = scmp.ne.s32.totalorder %s100, %s101
      %p110 = scmp.eq.s32.totalorder %s32, 0
      %p111 = por %p109, %p110
      %p112 = scmp.ne.s32.totalorder %s100, %s101
      %p113 = scmp.eq.s32.totalorder %s33, 1
      %p114 = por %p112, %p113
      %p116 = scmp.ne.s32.totalorder %s101, %s115
      %p117 = scmp.eq.s32.totalorder %s33, 0
      %p118 = por %p116, %p117
      %s120 = sadd.s32 %s119, 1
      %p123 = scmp.eq.s32.totalorder %s27, 1
      %p124 = scmp.ne.s32.totalorder %s119, %s121
      %p125 = scmp.eq.s32.totalorder %s27, 0
      %p126 = por %p124, %p125
      %p127 = scmp.ne.s32.totalorder %s119, %s121
      %p128 = scmp.eq.s32.totalorder %s32, 1
      %p129 = por %p127, %p128
      %p130 = scmp.ne.s32.totalorder %s121, %s122
      %p131 = scmp.eq.s32.totalorder %s32, 0
      %p132 = por %p130, %p131
      %p133 = scmp.ne.s32.totalorder %s121, %s122
      %p134 = scmp.eq.s32.totalorder %s33, 1
      %p135 = por %p133, %p134
      %p137 = scmp.ne.s32.totalorder %s122, %s136
      %p138 = scmp.eq.s32.totalorder %s33, 0
      %p139 = por %p137, %p138
      %s141 = sadd.s32 %s140, 1
      %p144 = scmp.eq.s32.totalorder %s27, 1
      %p145 = scmp.ne.s32.totalorder %s140, %s142
      %p146 = scmp.eq.s32.totalorder %s27, 0
      %p147 = por %p145, %p146
      %p148 = scmp.ne.s32.totalorder %s140, %s142
      %p149 = scmp.eq.s32.totalorder %s32, 1
      %p150 = por %p148, %p149
      %p151 = scmp.ne.s32.totalorder %s142, %s143
      %p152 = scmp.eq.s32.totalorder %s32, 0
      %p153 = por %p151, %p152
      %p154 = scmp.ne.s32.totalorder %s142, %s143
      %p155 = scmp.eq.s32.totalorder %s33, 1
      %p156 = por %p154, %p155
      %p158 = scmp.ne.s32.totalorder %s143, %s157
      %p159 = scmp.eq.s32.totalorder %s33, 0
      %p160 = por %p158, %p159
      %s162 = sadd.s32 %s161, 1
      %p165 = scmp.eq.s32.totalorder %s27, 1
      %p166 = scmp.ne.s32.totalorder %s161, %s163
      %p167 = scmp.eq.s32.totalorder %s27, 0
      %p168 = por %p166, %p167
      %p169 = scmp.ne.s32.totalorder %s161, %s163
      %p170 = scmp.eq.s32.totalorder %s32, 1
      %p171 = por %p169, %p170
      %p172 = scmp.ne.s32.totalorder %s163, %s164
      %p173 = scmp.eq.s32.totalorder %s32, 0
      %p174 = por %p172, %p173
      %p175 = scmp.ne.s32.totalorder %s163, %s164
      %p176 = scmp.eq.s32.totalorder %s33, 1
      %p177 = por %p175, %p176
      %p179 = scmp.ne.s32.totalorder %s164, %s178
      %p180 = scmp.eq.s32.totalorder %s33, 0
      %p181 = por %p179, %p180
      %s183 = sadd.s32 %s182, 1
      %p186 = scmp.eq.s32.totalorder %s27, 1
      %p187 = scmp.ne.s32.totalorder %s182, %s184
      %p188 = scmp.eq.s32.totalorder %s27, 0
      %p189 = por %p187, %p188
      %p190 = scmp.ne.s32.totalorder %s182, %s184
      %p191 = scmp.eq.s32.totalorder %s32, 1
      %p192 = por %p190, %p191
      %p193 = scmp.ne.s32.totalorder %s184, %s185
      %p194 = scmp.eq.s32.totalorder %s32, 0
      %p195 = por %p193, %p194
      %p196 = scmp.ne.s32.totalorder %s184, %s185
      %p197 = scmp.eq.s32.totalorder %s33, 1
      %p198 = por %p196, %p197
      %p200 = scmp.ne.s32.totalorder %s185, %s199
      %p201 = scmp.eq.s32.totalorder %s33, 0
      %p202 = por %p200, %p201
      %s204 = sadd.s32 %s203, 1
      %p207 = scmp.eq.s32.totalorder %s27, 1
      %p208 = scmp.ne.s32.totalorder %s203, %s205
      %p209 = scmp.eq.s32.totalorder %s27, 0
      %p210 = por %p208, %p209
      %p211 = scmp.ne.s32.totalorder %s203, %s205
      %p212 = scmp.eq.s32.totalorder %s32, 1
      %p213 = por %p211, %p212
      %p214 = scmp.ne.s32.totalorder %s205, %s206
      %p215 = scmp.eq.s32.totalorder %s32, 0
      %p216 = por %p214, %p215
      %p217 = scmp.ne.s32.totalorder %s205, %s206
      %p218 = scmp.eq.s32.totalorder %s33, 1
      %p219 = por %p217, %p218
      %p221 = scmp.ne.s32.totalorder %s206, %s220
      %p222 = scmp.eq.s32.totalorder %s33, 0
      %p223 = por %p221, %p222
      %s225 = sadd.s32 %s224, 1
      %p228 = scmp.eq.s32.totalorder %s27, 1
      %p229 = scmp.ne.s32.totalorder %s224, %s226
      %p230 = scmp.eq.s32.totalorder %s27, 0
      %p231 = por %p229, %p230
      %p232 = scmp.ne.s32.totalorder %s224, %s226
      %p233 = scmp.eq.s32.totalorder %s32, 1
      %p234 = por %p232, %p233
      %p235 = scmp.ne.s32.totalorder %s226, %s227
      %p236 = scmp.eq.s32.totalorder %s32, 0
      %p237 = por %p235, %p236
      %p238 = scmp.ne.s32.totalorder %s226, %s227
      %p239 = scmp.eq.s32.totalorder %s33, 1
      %p240 = por %p238, %p239
      %p242 = scmp.ne.s32.totalorder %s227, %s241
      %p243 = scmp.eq.s32.totalorder %s33, 0
      %p244 = por %p242, %p243
      %s246 = sadd.s32 %s245, 1
      %p249 = scmp.eq.s32.totalorder %s27, 1
      %p250 = scmp.ne.s32.totalorder %s245, %s247
      %p251 = scmp.eq.s32.totalorder %s27, 0
      %p252 = por %p250, %p251
      %p253 = scmp.ne.s32.totalorder %s245, %s247
      %p254 = scmp.eq.s32.totalorder %s32, 1
      %p255 = por %p253, %p254
      %p256 = scmp.ne.s32.totalorder %s247, %s248
      %p257 = scmp.eq.s32.totalorder %s32, 0
      %p258 = por %p256, %p257
      %p259 = scmp.ne.s32.totalorder %s247, %s248
      %p260 = scmp.eq.s32.totalorder %s33, 1
      %p261 = por %p259, %p260
      %p263 = scmp.ne.s32.totalorder %s248, %s262
      %p264 = scmp.eq.s32.totalorder %s33, 0
      %p265 = por %p263, %p264
      %s267 = sadd.s32 %s266, 1
      %p270 = scmp.eq.s32.totalorder %s27, 1
      %p271 = scmp.ne.s32.totalorder %s266, %s268
      %p272 = scmp.eq.s32.totalorder %s27, 0
      %p273 = por %p271, %p272
      %p274 = scmp.ne.s32.totalorder %s266, %s268
      %p275 = scmp.eq.s32.totalorder %s32, 1
      %p276 = por %p274, %p275
      %p277 = scmp.ne.s32.totalorder %s268, %s269
      %p278 = scmp.eq.s32.totalorder %s32, 0
      %p279 = por %p277, %p278
      %p280 = scmp.ne.s32.totalorder %s268, %s269
      %p281 = scmp.eq.s32.totalorder %s33, 1
      %p282 = por %p280, %p281
      %p284 = scmp.ne.s32.totalorder %s269, %s283
      %p285 = scmp.eq.s32.totalorder %s33, 0
      %p286 = por %p284, %p285
      %s288 = sadd.s32 %s287, 1
      %p291 = scmp.eq.s32.totalorder %s27, 1
      %p292 = scmp.ne.s32.totalorder %s287, %s289
      %p293 = scmp.eq.s32.totalorder %s27, 0
      %p294 = por %p292, %p293
      %p295 = scmp.ne.s32.totalorder %s287, %s289
      %p296 = scmp.eq.s32.totalorder %s32, 1
      %p297 = por %p295, %p296
      %p298 = scmp.ne.s32.totalorder %s289, %s290
      %p299 = scmp.eq.s32.totalorder %s32, 0
      %p300 = por %p298, %p299
      %p301 = scmp.ne.s32.totalorder %s289, %s290
      %p302 = scmp.eq.s32.totalorder %s33, 1
      %p303 = por %p301, %p302
      %p305 = scmp.ne.s32.totalorder %s290, %s304
      %p306 = scmp.eq.s32.totalorder %s33, 0
      %p307 = por %p305, %p306
      %s309 = sadd.s32 %s308, 1
      %p312 = scmp.eq.s32.totalorder %s27, 1
      %p313 = scmp.ne.s32.totalorder %s308, %s310
      %p314 = scmp.eq.s32.totalorder %s27, 0
      %p315 = por %p313, %p314
      %p316 = scmp.ne.s32.totalorder %s308, %s310
      %p317 = scmp.eq.s32.totalorder %s32, 1
      %p318 = por %p316, %p317
      %p319 = scmp.ne.s32.totalorder %s310, %s311
      %p320 = scmp.eq.s32.totalorder %s32, 0
      %p321 = por %p319, %p320
      %p322 = scmp.ne.s32.totalorder %s310, %s311
      %p323 = scmp.eq.s32.totalorder %s33, 1
      %p324 = por %p322, %p323
      %p326 = scmp.ne.s32.totalorder %s311, %s325
      %p327 = scmp.eq.s32.totalorder %s33, 0
      %p328 = por %p326, %p327
      %s329 = ssub.s32 %s27, %s34
      %p330 = scmp.eq.s32.totalorder %s329, 0
      %s332 = sadd.s32 %s331, 1
      %s333 = scalar_select %p330, %s331, %s332
      %p336 = pneg %p330
      %p337 = scmp.eq.s32.totalorder %s27, 1
      %p338 = por %p336, %p337
      %p339 = scmp.ne.s32.totalorder %s331, %s334
      %p340 = scmp.eq.s32.totalorder %s27, 0
      %p341 = por %p339, %p340
      %p342 = scmp.ne.s32.totalorder %s331, %s334
      %p343 = scmp.eq.s32.totalorder %s32, 1
      %p344 = por %p342, %p343
      %p345 = scmp.ne.s32.totalorder %s334, %s335
      %p346 = scmp.eq.s32.totalorder %s32, 0
      %p347 = por %p345, %p346
      %p348 = scmp.ne.s32.totalorder %s334, %s335
      %p349 = scmp.eq.s32.totalorder %s33, 1
      %p350 = por %p348, %p349
      %p352 = scmp.ne.s32.totalorder %s335, %s351
      %p353 = scmp.eq.s32.totalorder %s33, 0
      %p354 = por %p352, %p353
      %s355 = ssub.s32 %s27, %s34
      %p356 = scmp.eq.s32.totalorder %s355, 0
      %s358 = sadd.s32 %s357, 1
      %s359 = scalar_select %p356, %s357, %s358
      %p362 = pneg %p356
      %p363 = scmp.eq.s32.totalorder %s27, 1
      %p364 = por %p362, %p363
      %p365 = scmp.ne.s32.totalorder %s357, %s360
      %p366 = scmp.eq.s32.totalorder %s27, 0
      %p367 = por %p365, %p366
      %p368 = scmp.ne.s32.totalorder %s357, %s360
      %p369 = scmp.eq.s32.totalorder %s32, 1
      %p370 = por %p368, %p369
      %p371 = scmp.ne.s32.totalorder %s360, %s361
      %p372 = scmp.eq.s32.totalorder %s32, 0
      %p373 = por %p371, %p372
      %p374 = scmp.ne.s32.totalorder %s360, %s361
      %p375 = scmp.eq.s32.totalorder %s33, 1
      %p376 = por %p374, %p375
      %p378 = scmp.ne.s32.totalorder %s361, %s377
      %p379 = scmp.eq.s32.totalorder %s33, 0
      %p380 = por %p378, %p379
      %s382 = sadd.s32 %s381, 1
      %p385 = scmp.eq.s32.totalorder %s27, 1
      %p386 = scmp.ne.s32.totalorder %s381, %s383
      %p387 = scmp.eq.s32.totalorder %s27, 0
      %p388 = por %p386, %p387
      %p389 = scmp.ne.s32.totalorder %s381, %s383
      %p390 = scmp.eq.s32.totalorder %s32, 1
      %p391 = por %p389, %p390
      %p392 = scmp.ne.s32.totalorder %s383, %s384
      %p393 = scmp.eq.s32.totalorder %s32, 0
      %p394 = por %p392, %p393
      %p395 = scmp.ne.s32.totalorder %s383, %s384
      %p396 = scmp.eq.s32.totalorder %s33, 1
      %p397 = por %p395, %p396
      %p399 = scmp.ne.s32.totalorder %s384, %s398
      %p400 = scmp.eq.s32.totalorder %s33, 0
      %p401 = por %p399, %p400
      %s402 = ssub.s32 %s27, %s34
      %p403 = scmp.eq.s32.totalorder %s402, 0
      %s405 = sadd.s32 %s404, 1
      %s406 = scalar_select %p403, %s404, %s405
      %p409 = pneg %p403
      %p410 = scmp.eq.s32.totalorder %s27, 1
      %p411 = por %p409, %p410
      %p412 = scmp.ne.s32.totalorder %s404, %s407
      %p413 = scmp.eq.s32.totalorder %s27, 0
      %p414 = por %p412, %p413
      %p415 = scmp.ne.s32.totalorder %s404, %s407
      %p416 = scmp.eq.s32.totalorder %s32, 1
      %p417 = por %p415, %p416
      %p418 = scmp.ne.s32.totalorder %s407, %s408
      %p419 = scmp.eq.s32.totalorder %s32, 0
      %p420 = por %p418, %p419
      %p421 = scmp.ne.s32.totalorder %s407, %s408
      %p422 = scmp.eq.s32.totalorder %s33, 1
      %p423 = por %p421, %p422
      %p425 = scmp.ne.s32.totalorder %s408, %s424
      %p426 = scmp.eq.s32.totalorder %s33, 0
      %p427 = por %p425, %p426
      %p428 = scmp.le.s32.totalorder 1, %s27
      %p429 = scmp.lt.s32.totalorder %s27, 3
      %p430 = pnand %p428, %p429
      %p431 = pneg %p430
      // Predicated region
      $region9: #{tpu_custom_call.1} parent=5 // pred_check
        _
      $region10: #{tpu_custom_call.1} parent=5 // pred_check_branch
        %433 = sbr.rel (%p430) target = $region12
      $region11: #{tpu_custom_call.1} parent=5 // pred_region
        %s434 = ssub.s32 %s27, 1
        // Predicated region
        $region13: #{tpu_custom_call.1} parent=11 // pred_check
          %p435 = pneg %p48
        $region14: #{tpu_custom_call.1} parent=11 // pred_check_branch
          %437 = sbr.rel (%p435) target = $region16
        $region15: #{tpu_custom_call.1} parent=11 // pred_region
          _
        $region16: #{tpu_custom_call.1} parent=11 // pred_fallthru
          _
        // Predicated region
        $region17: #{tpu_custom_call.1} parent=11 // pred_check
          %p438 = pneg %p69
        $region18: #{tpu_custom_call.1} parent=11 // pred_check_branch
          %440 = sbr.rel (%p438) target = $region20
        $region19: #{tpu_custom_call.1} parent=11 // pred_region
          _
        $region20: #{tpu_custom_call.1} parent=11 // pred_fallthru
          _
        // Predicated region
        $region21: #{tpu_custom_call.1} parent=11 // pred_check
          %p441 = pneg %p90
        $region22: #{tpu_custom_call.1} parent=11 // pred_check_branch
          %443 = sbr.rel (%p441) target = $region24
        $region23: #{tpu_custom_call.1} parent=11 // pred_region
          _
        $region24: #{tpu_custom_call.1} parent=11 // pred_fallthru
          _
        // Predicated region
        $region25: #{tpu_custom_call.1} parent=11 // pred_check
          %p444 = pneg %p111
        $region26: #{tpu_custom_call.1} parent=11 // pred_check_branch
          %446 = sbr.rel (%p444) target = $region28
        $region27: #{tpu_custom_call.1} parent=11 // pred_region
          _
        $region28: #{tpu_custom_call.1} parent=11 // pred_fallthru
          _
        // Predicated region
        $region29: #{tpu_custom_call.1} parent=11 // pred_check
          %p447 = pneg %p132
        $region30: #{tpu_custom_call.1} parent=11 // pred_check_branch
          %449 = sbr.rel (%p447) target = $region32
        $region31: #{tpu_custom_call.1} parent=11 // pred_region
          _
        $region32: #{tpu_custom_call.1} parent=11 // pred_fallthru
          _
        // Predicated region
        $region33: #{tpu_custom_call.1} parent=11 // pred_check
          %p450 = pneg %p153
        $region34: #{tpu_custom_call.1} parent=11 // pred_check_branch
          %452 = sbr.rel (%p450) target = $region36
        $region35: #{tpu_custom_call.1} parent=11 // pred_region
          _
        $region36: #{tpu_custom_call.1} parent=11 // pred_fallthru
          _
        // Predicated region
        $region37: #{tpu_custom_call.1} parent=11 // pred_check
          %p453 = pneg %p174
        $region38: #{tpu_custom_call.1} parent=11 // pred_check_branch
          %455 = sbr.rel (%p453) target = $region40
        $region39: #{tpu_custom_call.1} parent=11 // pred_region
          _
        $region40: #{tpu_custom_call.1} parent=11 // pred_fallthru
          _
        // Predicated region
        $region41: #{tpu_custom_call.1} parent=11 // pred_check
          %p456 = pneg %p195
        $region42: #{tpu_custom_call.1} parent=11 // pred_check_branch
          %458 = sbr.rel (%p456) target = $region44
        $region43: #{tpu_custom_call.1} parent=11 // pred_region
          _
        $region44: #{tpu_custom_call.1} parent=11 // pred_fallthru
          _
        // Predicated region
        $region45: #{tpu_custom_call.1} parent=11 // pred_check
          %p459 = pneg %p216
        $region46: #{tpu_custom_call.1} parent=11 // pred_check_branch
          %461 = sbr.rel (%p459) target = $region48
        $region47: #{tpu_custom_call.1} parent=11 // pred_region
          _
        $region48: #{tpu_custom_call.1} parent=11 // pred_fallthru
          _
        // Predicated region
        $region49: #{tpu_custom_call.1} parent=11 // pred_check
          %p462 = pneg %p237
        $region50: #{tpu_custom_call.1} parent=11 // pred_check_branch
          %464 = sbr.rel (%p462) target = $region52
        $region51: #{tpu_custom_call.1} parent=11 // pred_region
          _
        $region52: #{tpu_custom_call.1} parent=11 // pred_fallthru
          _
        // Predicated region
        $region53: #{tpu_custom_call.1} parent=11 // pred_check
          %p465 = pneg %p258
        $region54: #{tpu_custom_call.1} parent=11 // pred_check_branch
          %467 = sbr.rel (%p465) target = $region56
        $region55: #{tpu_custom_call.1} parent=11 // pred_region
          _
        $region56: #{tpu_custom_call.1} parent=11 // pred_fallthru
          _
        // Predicated region
        $region57: #{tpu_custom_call.1} parent=11 // pred_check
          %p468 = pneg %p279
        $region58: #{tpu_custom_call.1} parent=11 // pred_check_branch
          %470 = sbr.rel (%p468) target = $region60
        $region59: #{tpu_custom_call.1} parent=11 // pred_region
          _
        $region60: #{tpu_custom_call.1} parent=11 // pred_fallthru
          _
        // Predicated region
        $region61: #{tpu_custom_call.1} parent=11 // pred_check
          %p471 = pneg %p300
        $region62: #{tpu_custom_call.1} parent=11 // pred_check_branch
          %473 = sbr.rel (%p471) target = $region64
        $region63: #{tpu_custom_call.1} parent=11 // pred_region
          _
        $region64: #{tpu_custom_call.1} parent=11 // pred_fallthru
          _
        // Predicated region
        $region65: #{tpu_custom_call.1} parent=11 // pred_check
          %p474 = pneg %p321
        $region66: #{tpu_custom_call.1} parent=11 // pred_check_branch
          %476 = sbr.rel (%p474) target = $region68
        $region67: #{tpu_custom_call.1} parent=11 // pred_region
          _
        $region68: #{tpu_custom_call.1} parent=11 // pred_fallthru
          _
        // Predicated region
        $region69: #{tpu_custom_call.1} parent=11 // pred_check
          %p477 = pneg %p394
        $region70: #{tpu_custom_call.1} parent=11 // pred_check_branch
          %479 = sbr.rel (%p477) target = $region72
        $region71: #{tpu_custom_call.1} parent=11 // pred_region
          _
        $region72: #{tpu_custom_call.1} parent=11 // pred_fallthru
          _
      $region12: #{tpu_custom_call.1} parent=5 // pred_fallthru
        _
      %p480 = scmp.lt.s32.totalorder %s27, 2
      // Predicated region
      $region73: #{tpu_custom_call.1} parent=5 // pred_check
        %p481 = pneg %p480
      $region74: #{tpu_custom_call.1} parent=5 // pred_check_branch
        %483 = sbr.rel (%p481) target = $region76
      $region75: #{tpu_custom_call.1} parent=5 // pred_region
        // Predicated region
        $region77: #{tpu_custom_call.1} parent=75 // pred_check
          %p484 = pneg %p341
        $region78: #{tpu_custom_call.1} parent=75 // pred_check_branch
          %486 = sbr.rel (%p484) target = $region80
        $region79: #{tpu_custom_call.1} parent=75 // pred_region
          %s487 = smul.u32 2, %s27
          %p488 = scmp.lt.s32.totalorder %s487, 3
          %s489 = scalar_select %p488, %s487, 3
          %s490 = smul.addr %s489, 2
          %s491 = scalar_lea.vmem %s14, %s490
          %s492 = smul.u32 2, %s27
        $region80: #{tpu_custom_call.1} parent=75 // pred_fallthru
          _
        // Predicated region
        $region81: #{tpu_custom_call.1} parent=75 // pred_check
          %p493 = pneg %p367
        $region82: #{tpu_custom_call.1} parent=75 // pred_check_branch
          %495 = sbr.rel (%p493) target = $region84
        $region83: #{tpu_custom_call.1} parent=75 // pred_region
          %s496 = smul.u32 2, %s27
          %p497 = scmp.lt.s32.totalorder %s496, 3
          %s498 = scalar_select %p497, %s496, 3
          %s499 = smul.addr %s498, 4
          %s500 = scalar_lea.vmem %s15, %s499
          %s501 = smul.u32 2, %s27
        $region84: #{tpu_custom_call.1} parent=75 // pred_fallthru
          _
      $region76: #{tpu_custom_call.1} parent=5 // pred_fallthru
        _
      %p502 = scmp.le.s32.totalorder 1, %s27
      %p503 = scmp.lt.s32.totalorder %s27, 3
      %p504 = pnand %p502, %p503
      %p505 = pneg %p504
      // Predicated region
      $region85: #{tpu_custom_call.1} parent=5 // pred_check
        _
      $region86: #{tpu_custom_call.1} parent=5 // pred_check_branch
        %507 = sbr.rel (%p504) target = $region88
      $region87: #{tpu_custom_call.1} parent=5 // pred_region
        %s508 = ssub.s32 %s27, 1
        %p509 = pneg %p48
        %p510 = pneg %p45
        %p511 = pneg %p69
        %p512 = pneg %p66
        %p513 = pneg %p90
        %p514 = pneg %p87
        %p515 = pneg %p111
        %p516 = pneg %p108
        %p517 = pneg %p132
        %p518 = pneg %p129
        %p519 = pneg %p153
        %p520 = pneg %p150
        %p521 = pneg %p174
        %p522 = pneg %p171
        %p523 = pneg %p195
        %p524 = pneg %p192
        %p525 = pneg %p216
        %p526 = pneg %p213
        %p527 = pneg %p237
        %p528 = pneg %p234
        %p529 = pneg %p258
        %p530 = pneg %p255
        %p531 = pneg %p279
        %p532 = pneg %p276
        %p533 = pneg %p300
        %p534 = pneg %p297
        %p535 = pneg %p321
        %p536 = pneg %p318
        %s537 = smul.u32 2, %s32
        %p538 = scmp.lt.s32.totalorder %s537, 3
        %s539 = scalar_select %p538, %s537, 3
        %s540 = smul.addr %s539, 2
        %s541 = scalar_lea.vmem %s14, %s540
        %p542 = pneg %p347
        %p543 = pneg %p344
        %s544 = smul.u32 2, %s32
        %p545 = scmp.lt.s32.totalorder %s544, 3
        %s546 = scalar_select %p545, %s544, 3
        %s547 = smul.addr %s546, 4
        %s548 = scalar_lea.vmem %s15, %s547
        %p549 = pneg %p373
        %p550 = pneg %p370
        %p551 = pneg %p394
        %p552 = pneg %p391
        %p553 = pneg %p420
        %p554 = pneg %p417
        %s555 = sand.u32 %s407, 1
        %s556 = scalar_lea.sflag [#allocation4], %s555
        %s557 = sand.u32 %s407, 1
        %s558 = smul.addr %s557, 16
        %s559 = scalar_lea.vmem [#allocation3], %s558
        %s560 = smul.u32 2, %s32
        %p561 = scmp.lt.s32.totalorder %s560, 3
        %s562 = scalar_select %p561, %s560, 3
        %s563 = smul.addr %s562, 2
        %s564 = scalar_lea.vmem %s14, %s563
        %s565 = smul.u32 2, %s32
        %s566 = smul.u32 2, %s32
        %p567 = scmp.lt.s32.totalorder %s566, 3
        %s568 = scalar_select %p567, %s566, 3
        %s569 = smul.addr %s568, 4
        %s570 = scalar_lea.vmem %s15, %s569
        %s571 = smul.u32 2, %s32
        %s572 = smul.u32 2, %s32
        %v573 = vld [vmem:[%s0] sm:$0xff]
        %v574 = vld [vmem:[%s2] sm:$0xff]
        %v575 = vld [vmem:[%s2 + $0x8] sm:$0x3]
        %v576 = vld [vmem:[%s3] sm:$0x1]
        %v578 = vperm.slane %v576, 0
        %vm580 = vcmask 80896
        %v582 = vsel %vm580, %v573, 0
        %vm584 = vcmask 1041408
        %v586 = vsel %vm584, %v575, 0
        %588 = vmatpush.msra.mxu0 0.0
        %589 = vmatpush.msra.mxu0 0.0
        %590 = vmatpush.msra.mxu0 0.0
        %591 = vmatpush.msra.mxu0 0.0
        %592 = vmatpush.msra.mxu0 0.0
        %593 = vmatpush.msra.mxu0 0.0
        %594 = vmatpush.msra.mxu0 0.0
        %595 = vmatpush.msra.mxu0 0.0
        %596 = vmatpush.msra.mxu0 0.0
        %597 = vmatpush.msra.mxu0 0.0
        %598 = vmatpush.msra.mxu0 0.0
        %599 = vmatpush.msra.mxu0 0.0
        %600 = vmatpush.msra.mxu0 0.0
        %601 = vmatpush.msra.mxu0 0.0
        %602 = vmatpush.msra.mxu0 %v586
        %603 = vmatpush.msra.mxu0 %v574
        %604 = vmatmul.f32.gmra.mxu0 %v582
        %v605 = vpop.f32.mrf.mxu0
        %v606 = vadd.f32 %v578, %v605
        %607 = vdwg.mxu0
        %v608 = vtanh.pop %v606
        %v609 = vld [vmem:[%s4] sm:$0xff]
        %v610 = vld [vmem:[%s4 + $0x8] sm:$0xff]
        %v611 = vld [vmem:[%s4 + $0x10] sm:$0xff]
        %v612 = vld [vmem:[%s4 + $0x18] sm:$0xff]
        %v613 = vld [vmem:[%s5] sm:$0x1]
        %v615 = vperm.slane %v613, 0
        %vm617 = vcmask 261120
        %v619 = vsel %vm617, %v608, 0
        %621 = vmatpush.msra.mxu0 0.0
        %622 = vmatpush.msra.mxu0 0.0
        %623 = vmatpush.msra.mxu0 0.0
        %624 = vmatpush.msra.mxu0 0.0
        %625 = vmatpush.msra.mxu0 0.0
        %626 = vmatpush.msra.mxu0 0.0
        %627 = vmatpush.msra.mxu0 0.0
        %628 = vmatpush.msra.mxu0 0.0
        %629 = vmatpush.msra.mxu0 0.0
        %630 = vmatpush.msra.mxu0 0.0
        %631 = vmatpush.msra.mxu0 0.0
        %632 = vmatpush.msra.mxu0 0.0
        %633 = vmatpush.msra.mxu0 %v612
        %634 = vmatpush.msra.mxu0 %v611
        %635 = vmatpush.msra.mxu0 %v610
        %636 = vmatpush.msra.mxu0 %v609
        %637 = vmatmul.f32.gmra.mxu0 %v619
        %v638 = vpop.f32.mrf.mxu0
        %v639 = vadd.f32 %v615, %v638
        %640 = vdwg.mxu0
        %v641 = vld [vmem:[%s1] sm:$0xff]
        %v642 = vld [vmem:[%s6] sm:$0xff]
        %v643 = vld [vmem:[%s6 + $0x8] sm:$0xf]
        %v644 = vld [vmem:[%s7] sm:$0x1]
        %v646 = vperm.slane %v644, 0
        %vm648 = vcmask 97280
        %v650 = vsel %vm648, %v641, 0
        %vm652 = vcmask 1043456
        %v654 = vsel %vm652, %v643, 0
        %656 = vmatpush.msra.mxu0 0.0
        %657 = vmatpush.msra.mxu0 0.0
        %658 = vmatpush.msra.mxu0 0.0
        %659 = vmatpush.msra.mxu0 0.0
        %660 = vmatpush.msra.mxu0 0.0
        %661 = vmatpush.msra.mxu0 0.0
        %662 = vmatpush.msra.mxu0 0.0
        %663 = vmatpush.msra.mxu0 0.0
        %664 = vmatpush.msra.mxu0 0.0
        %665 = vmatpush.msra.mxu0 0.0
        %666 = vmatpush.msra.mxu0 0.0
        %667 = vmatpush.msra.mxu0 0.0
        %668 = vmatpush.msra.mxu0 0.0
        %669 = vmatpush.msra.mxu0 0.0
        %670 = vmatpush.msra.mxu0 %v654
        %671 = vmatpush.msra.mxu0 %v642
        %672 = vmatmul.f32.gmra.mxu0 %v650
        %v673 = vpop.f32.mrf.mxu0
        %v674 = vadd.f32 %v646, %v673
        %675 = vdwg.mxu0
        %v676 = vtanh.pop %v674
        %v677 = vld [vmem:[%s8] sm:$0xff]
        %v678 = vld [vmem:[%s8 + $0x8] sm:$0xff]
        %v679 = vld [vmem:[%s8 + $0x10] sm:$0xff]
        %v680 = vld [vmem:[%s8 + $0x18] sm:$0xff]
        %v681 = vld [vmem:[%s9] sm:$0x1]
        %v683 = vperm.slane %v681, 0
        %v686 = vsel %vm617, %v676, 0
        %688 = vmatpush.msra.mxu0 0.0
        %689 = vmatpush.msra.mxu0 0.0
        %690 = vmatpush.msra.mxu0 0.0
        %691 = vmatpush.msra.mxu0 0.0
        %692 = vmatpush.msra.mxu0 0.0
        %693 = vmatpush.msra.mxu0 0.0
        %694 = vmatpush.msra.mxu0 0.0
        %695 = vmatpush.msra.mxu0 0.0
        %696 = vmatpush.msra.mxu0 0.0
        %697 = vmatpush.msra.mxu0 0.0
        %698 = vmatpush.msra.mxu0 0.0
        %699 = vmatpush.msra.mxu0 0.0
        %700 = vmatpush.msra.mxu0 %v680
        %701 = vmatpush.msra.mxu0 %v679
        %702 = vmatpush.msra.mxu0 %v678
        %703 = vmatpush.msra.mxu0 %v677
        %704 = vmatmul.f32.gmra.mxu0 %v686
        %v705 = vpop.f32.mrf.mxu0
        %v706 = vadd.f32 %v683, %v705
        %707 = vdwg.mxu0
        %v708 = vmul.f32 %v639, %v706
        %v709 = vld [vmem:[%s564] sm:$0xf]
        %v710 = vld [vmem:[%s10] sm:$0xff]
        %v711 = vld [vmem:[%s10 + $0x8] sm:$0xff]
        %v712 = vld [vmem:[%s10 + $0x10] sm:$0xff]
        %v713 = vld [vmem:[%s10 + $0x18] sm:$0xff]
        %715 = vset.pattern.permute.xlu0 0
        %716 = vperm.xlu0 %715, %v710
        %v717 = vpop.permute.xlu0 %716
        %720 = vset.pattern.permute.xlu0 0
        %721 = vperm.xlu0 %720, %v711
        %v722 = vpop.permute.xlu0 %721
        %725 = vset.pattern.permute.xlu0 0
        %726 = vperm.xlu0 %725, %v712
        %v727 = vpop.permute.xlu0 %726
        %730 = vset.pattern.permute.xlu0 0
        %731 = vperm.xlu0 %730, %v713
        %v732 = vpop.permute.xlu0 %731
        %v735 = vperm.slane %v709, 0
        %v736 = vperm.slane %v709, 2
        %v739 = vperm.slane %v735, 0
        %v740 = vperm.slane %v736, 0
        %v741 = vmul.f32 %v717, %v739
        %v742 = vmul.f32 %v717, %v740
        %v743 = vmul.f32 %v722, %v739
        %v744 = vmul.f32 %v722, %v740
        %v745 = vmul.f32 %v727, %v739
        %v746 = vmul.f32 %v727, %v740
        %v747 = vmul.f32 %v732, %v739
        %v748 = vmul.f32 %v732, %v740
        %749 = vset.pattern.permute.xlu0 1
        %750 = vperm.xlu0 %749, %v710
        %v751 = vpop.permute.xlu0 %750
        %753 = vset.pattern.permute.xlu0 1
        %754 = vperm.xlu0 %753, %v711
        %v755 = vpop.permute.xlu0 %754
        %757 = vset.pattern.permute.xlu0 1
        %758 = vperm.xlu0 %757, %v712
        %v759 = vpop.permute.xlu0 %758
        %761 = vset.pattern.permute.xlu0 1
        %762 = vperm.xlu0 %761, %v713
        %v763 = vpop.permute.xlu0 %762
        %v765 = vperm.slane %v709, 1
        %v766 = vperm.slane %v709, 3
        %v769 = vperm.slane %v765, 1
        %v770 = vperm.slane %v766, 1
        %v771 = vmul.f32 %v751, %v769
        %v772 = vmul.f32 %v751, %v770
        %v773 = vmul.f32 %v755, %v769
        %v774 = vmul.f32 %v755, %v770
        %v775 = vmul.f32 %v759, %v769
        %v776 = vmul.f32 %v759, %v770
        %v777 = vmul.f32 %v763, %v769
        %v778 = vmul.f32 %v763, %v770
        %v779 = vadd.f32 %v741, %v771
        %v780 = vadd.f32 %v742, %v772
        %v781 = vadd.f32 %v743, %v773
        %v782 = vadd.f32 %v744, %v774
        %v783 = vadd.f32 %v745, %v775
        %v784 = vadd.f32 %v746, %v776
        %v785 = vadd.f32 %v747, %v777
        %v786 = vadd.f32 %v748, %v778
        %v787 = vld [vmem:[%s11] sm:$0xff]
        %v788 = vld [vmem:[%s11 + $0x8] sm:$0xff]
        %v789 = vld [vmem:[%s11 + $0x10] sm:$0xff]
        %v790 = vld [vmem:[%s11 + $0x18] sm:$0xff]
        %792 = vset.pattern.permute.xlu0 0
        %793 = vperm.xlu0 %792, %v787
        %v794 = vpop.permute.xlu0 %793
        %797 = vset.pattern.permute.xlu0 0
        %798 = vperm.xlu0 %797, %v788
        %v799 = vpop.permute.xlu0 %798
        %802 = vset.pattern.permute.xlu0 0
        %803 = vperm.xlu0 %802, %v789
        %v804 = vpop.permute.xlu0 %803
        %807 = vset.pattern.permute.xlu0 0
        %808 = vperm.xlu0 %807, %v790
        %v809 = vpop.permute.xlu0 %808
        %v811 = vadd.f32 %v779, %v794
        %v812 = vadd.f32 %v780, %v794
        %v813 = vadd.f32 %v781, %v799
        %v814 = vadd.f32 %v782, %v799
        %v815 = vadd.f32 %v783, %v804
        %v816 = vadd.f32 %v784, %v804
        %v817 = vadd.f32 %v785, %v809
        %v818 = vadd.f32 %v786, %v809
        %v819 = vtanh.pop %v811
        %v820 = vtanh.pop %v812
        %v821 = vtanh.pop %v813
        %v822 = vtanh.pop %v814
        %v823 = vtanh.pop %v815
        %v824 = vtanh.pop %v816
        %v825 = vtanh.pop %v817
        %v826 = vtanh.pop %v818
        %v827 = vld [vmem:[%s12] sm:$0xff]
        %v828 = vld [vmem:[%s13] sm:$0xff]
        %830 = vset.pattern.permute.xlu0 0
        %831 = vperm.xlu0 %830, %v828
        %v832 = vpop.permute.xlu0 %831
        %v835 = vsel %vm617, %v827, 0
        %837 = vmatpush.msra.mxu0 0.0
        %838 = vmatpush.msra.mxu0 0.0
        %839 = vmatpush.msra.mxu0 0.0
        %840 = vmatpush.msra.mxu0 0.0
        %841 = vmatpush.msra.mxu0 0.0
        %842 = vmatpush.msra.mxu0 0.0
        %843 = vmatpush.msra.mxu0 0.0
        %844 = vmatpush.msra.mxu0 0.0
        %845 = vmatpush.msra.mxu0 0.0
        %846 = vmatpush.msra.mxu0 0.0
        %847 = vmatpush.msra.mxu0 0.0
        %848 = vmatpush.msra.mxu0 0.0
        %849 = vmatpush.msra.mxu0 %v825
        %850 = vmatpush.msra.mxu0 %v823
        %851 = vmatpush.msra.mxu0 %v821
        %852 = vmatpush.msra.mxu0 %v819
        %853 = vmatmul.f32.gmra.mxu0 %v835
        %v854 = vpop.f32.mrf.mxu0
        %v855 = vadd.f32 %v832, %v854
        %856 = vdwg.mxu0
        %857 = vmatpush.msra.mxu0 0.0
        %858 = vmatpush.msra.mxu0 0.0
        %859 = vmatpush.msra.mxu0 0.0
        %860 = vmatpush.msra.mxu0 0.0
        %861 = vmatpush.msra.mxu0 0.0
        %862 = vmatpush.msra.mxu0 0.0
        %863 = vmatpush.msra.mxu0 0.0
        %864 = vmatpush.msra.mxu0 0.0
        %865 = vmatpush.msra.mxu0 0.0
        %866 = vmatpush.msra.mxu0 0.0
        %867 = vmatpush.msra.mxu0 0.0
        %868 = vmatpush.msra.mxu0 0.0
        %869 = vmatpush.msra.mxu0 %v826
        %870 = vmatpush.msra.mxu0 %v824
        %871 = vmatpush.msra.mxu0 %v822
        %872 = vmatpush.msra.mxu0 %v820
        %873 = vmatmul.f32.gmra.mxu0 %v835
        %v874 = vpop.f32.mrf.mxu0
        %v875 = vadd.f32 %v832, %v874
        %876 = vdwg.mxu0
        %v877 = vld [vmem:[%s570] sm:$0xff]
        %v878 = vunpack.c.l.bf16 %v877
        %v879 = vunpack.c.h.bf16 %v877
        %s880 = sld [smem:[#allocation2]]
        %v881 = vstv %s880
        %vm882 = vcmask 130048
        %v884 = vsel %vm882, %v708, 0
        %886 = vmatpush.msra.mxu0 0.0
        %887 = vmatpush.msra.mxu0 0.0
        %888 = vmatpush.msra.mxu0 0.0
        %889 = vmatpush.msra.mxu0 0.0
        %890 = vmatpush.msra.mxu0 0.0
        %891 = vmatpush.msra.mxu0 0.0
        %892 = vmatpush.msra.mxu0 0.0
        %893 = vmatpush.msra.mxu0 0.0
        %894 = vmatpush.msra.mxu0 0.0
        %895 = vmatpush.msra.mxu0 0.0
        %896 = vmatpush.msra.mxu0 0.0
        %897 = vmatpush.msra.mxu0 0.0
        %898 = vmatpush.msra.mxu0 0.0
        %899 = vmatpush.msra.mxu0 0.0
        %900 = vmatpush.msra.mxu0 %v855
        %901 = vmatpush.msra.mxu0 %v878
        %902 = vmatmul.f32.gmra.mxu0 %v884
        %v903 = vpop.f32.mrf.mxu0
        %v904 = vadd.f32 %v881, %v903
        %905 = vdwg.mxu0
        %906 = vmatpush.msra.mxu0 0.0
        %907 = vmatpush.msra.mxu0 0.0
        %908 = vmatpush.msra.mxu0 0.0
        %909 = vmatpush.msra.mxu0 0.0
        %910 = vmatpush.msra.mxu0 0.0
        %911 = vmatpush.msra.mxu0 0.0
        %912 = vmatpush.msra.mxu0 0.0
        %913 = vmatpush.msra.mxu0 0.0
        %914 = vmatpush.msra.mxu0 0.0
        %915 = vmatpush.msra.mxu0 0.0
        %916 = vmatpush.msra.mxu0 0.0
        %917 = vmatpush.msra.mxu0 0.0
        %918 = vmatpush.msra.mxu0 0.0
        %919 = vmatpush.msra.mxu0 0.0
        %920 = vmatpush.msra.mxu0 %v875
        %921 = vmatpush.msra.mxu0 %v879
        %922 = vmatmul.f32.gmra.mxu0 %v884
        %v923 = vpop.f32.mrf.mxu0
        %v924 = vadd.f32 %v881, %v923
        %925 = vdwg.mxu0
        %926 = vst [vmem:[%s559] sm:$0xff] %v904
        %927 = vst [vmem:[%s559 + $0x8] sm:$0xff] %v924
        %s928 = sand.u32 %s407, 1
        %s929 = scalar_lea.sflag [#allocation4], %s928
        %s930 = sand.u32 %s407, 1
        %s931 = smul.addr %s930, 16
        %s932 = scalar_lea.vmem [#allocation3], %s931
        // Predicated region
        $region89: #{tpu_custom_call.1} parent=87 // pred_check
          %p933 = pneg %p417
        $region90: #{tpu_custom_call.1} parent=87 // pred_check_branch
          %935 = sbr.rel (%p933) target = $region92
        $region91: #{tpu_custom_call.1} parent=87 // pred_region
          %s936 = smul.u32 2, %s32
          %938 = vsyncadd %s929, 0
          %s939 = smul.addr %s936, 8
          %s940 = scalar_lea.hbm %s17, %s939
          %s942 = sshll.u32 %s932, 4
          %s943 = int_to_ptr.vmem [resolvable:$true] %s942
          %s944 = sshll.u32 %s940, 4
          %s945 = int_to_ptr.hbm [resolvable:$true] %s944
          %947 = dma.vmem_to_hbm [thread:$0]  %s943, 256, %s945, %s929
        $region92: #{tpu_custom_call.1} parent=87 // pred_fallthru
          _
      $region88: #{tpu_custom_call.1} parent=5 // pred_fallthru
        _
      %p948 = scmp.le.s32.totalorder 2, %s27
      // Predicated region
      $region93: #{tpu_custom_call.1} parent=5 // pred_check
        %p949 = pneg %p948
      $region94: #{tpu_custom_call.1} parent=5 // pred_check_branch
        %951 = sbr.rel (%p949) target = $region96
      $region95: #{tpu_custom_call.1} parent=5 // pred_region
        %s952 = ssub.s32 %s27, 2
        // Predicated region
        $region97: #{tpu_custom_call.1} parent=95 // pred_check
          %p953 = pneg %p423
        $region98: #{tpu_custom_call.1} parent=95 // pred_check_branch
          %955 = sbr.rel (%p953) target = $region100
        $region99: #{tpu_custom_call.1} parent=95 // pred_region
          %s956 = sand.u32 %s408, 1
          %s957 = scalar_lea.sflag [#allocation4], %s956
          %s958 = sand.u32 %s408, 1
          %s959 = smul.addr %s958, 16
          %s960 = scalar_lea.vmem [#allocation3], %s959
          %962 = dma.done %s957, 256
        $region100: #{tpu_custom_call.1} parent=95 // pred_fallthru
          _
      $region96: #{tpu_custom_call.1} parent=5 // pred_fallthru
        _
    $region6: #{tpu_custom_call.1} parent=1 // loop_footer
      %s31 = sadd.s32 1, %s27
    $region7: #{tpu_custom_call.1} parent=1 // loop_footer_branch
      %26 = sbr.rel target = $region3
    $region8: #{tpu_custom_call.1} parent=1 // loop_exit
      _
    %963 = vsyncpa [#allocation4], 1
    %s964 = scalar_lea.sflag [#allocation4], 1
    %965 = vsyncpa %s964, 1

</llo_original>
